<compile_context>
chip_gen: v7x
topology: tpu7x:2x2x1
jax: 0.10.0
libtpu: 0.0.40
codegen_flags: <defaults>
</compile_context>

<pallas_src>
import jax
import jax.numpy as jnp
from jax.experimental import pallas as pl
from jax.experimental.pallas import tpu as pltpu


def _round_up(x, m):
    return ((x + m - 1) // m) * m


def additive_attention_kernel(cand_ref, wbd_ref, b_ref, qrep_ref, sel_ref, out_ref):
    # cand_ref: (TB, S*C)   lane-dense candidate tile
    # wbd_ref : (S*C, S*Q)  block-diagonal linear weight
    # b_ref   : (1, S*Q)    bias tiled S times
    # qrep_ref: (S*Q, S*C)  block-diagonal attention-query, repeated across C lanes
    # sel_ref : (S*C, C)    0/1 candidate-group sum matrix, scaled by C (softmax fixup)
    # out_ref : (TB, C)
    cand = cand_ref[...]                                     # input dtype, no eager upcast

    # Linear + tanh.  Output (TB, S*Q) is natively lane-dense -> no padded EUP work.
    temp = jnp.tanh(
        jnp.dot(cand, wbd_ref[...], preferred_element_type=jnp.float32) + b_ref[...])

    # scores, already repeated across each candidate's C lanes:
    # scores_rep[b, s*C + c] = sum_q temp[b, s*Q + q] * qv[q]
    scores_rep = jnp.dot(temp, qrep_ref[...], preferred_element_type=jnp.float32)  # (TB, S*C)

    # Softmax over candidates (lane axis).  Each score is repeated C times, so the lane-sum
    # equals C * true denominator; the 1/C is folded into `sel` in the wrapper.
    m = jnp.max(scores_rep, axis=-1, keepdims=True)
    e = jnp.exp(scores_rep - m)
    denom = jnp.sum(e, axis=-1, keepdims=True)               # = C * sum_s exp(...)
    weights_rep = e * pl.reciprocal(denom, approx=True)      # true softmax / C, repeated
    # TODO(synk): training-mode dropout on `weights_rep` not implemented (inference only).

    # Weighted sum of candidate vectors: VPU multiply + segmented lane reduce as a matmul.
    weighted = cand * weights_rep.astype(cand.dtype)          # (TB, S*C)
    target = jnp.dot(weighted, sel_ref[...].astype(weighted.dtype),
                     preferred_element_type=jnp.float32)      # (TB, C); sel carries the *C
    out_ref[...] = target.astype(out_ref.dtype)


def additive_attention(candidate_vector, weight_t, bias, query_vector, *, block_b=1024):
    """candidate_vector: (B, S, C); weight_t: (C, Q); bias: (Q,); query_vector: (Q,)."""
    B, S, C = candidate_vector.shape
    Cw, Q = weight_t.shape
    assert Cw == C
    dtype = candidate_vector.dtype
    f32 = jnp.float32

    # ---- batch tile selection ----
    # Multiple of 8 (sublane), capped at 2048; prefer >= 4 grid steps when B allows it so the
    # "parallel" axis feeds both v7x TensorCores and the pipeline has steps to overlap; cap
    # further so the double-buffered input tile stays <= ~8 MiB of VMEM.
    min_steps = 4
    TB = max(8, (min(int(block_b), 2048) // 8) * 8)
    TB = min(TB, _round_up(-(-B // min_steps), 8))
    bytes_per_row = S * C * jnp.dtype(dtype).itemsize
    TB = min(TB, max(8, ((8 * 1024 * 1024) // (2 * bytes_per_row) // 8) * 8))
    TB = max(TB, 8)
    B_pad = _round_up(B, TB)

    # Lane-dense input layout (free contiguous reshape in XLA).
    cand2d = candidate_vector.reshape(B, S * C)
    if B_pad != B:
        cand2d = jnp.pad(cand2d, ((0, B_pad - B), (0, 0)))

    # Constant matrices (built once in the wrapper; tiny at this module's shapes).
    eye_s = jnp.eye(S, dtype=f32)
    # Block-diagonal linear weight: wbd[s*C+c, s*Q+q] = W^T[c, q].
    wbd = jnp.kron(eye_s, weight_t.astype(f32)).astype(dtype)                       # (S*C, S*Q)
    bias_t = jnp.tile(bias.astype(f32), S).reshape(1, S * Q)                        # (1, S*Q)
    # qrep[s*Q+q, s*C+c] = qv[q]  (scores broadcast across each candidate's C lanes).
    qrep = jnp.kron(eye_s, query_vector.astype(f32).reshape(Q, 1) * jnp.ones((1, C), f32))
    # sel[s*C+c, c'] = C * (c == c')  (sum over candidate groups; folds the 1/C above).
    sel = jnp.kron(jnp.ones((S, 1), dtype=f32), jnp.eye(C, dtype=f32) * float(C))   # (S*C, C)

    out = pl.pallas_call(
        additive_attention_kernel,
        out_shape=jax.ShapeDtypeStruct((B_pad, C), dtype),
        grid_spec=pltpu.PrefetchScalarGridSpec(
            num_scalar_prefetch=0,
            grid=(B_pad // TB,),
            in_specs=[
                pl.BlockSpec((TB, S * C), lambda i: (i, 0)),
                pl.BlockSpec((S * C, S * Q), lambda i: (0, 0)),
                pl.BlockSpec((1, S * Q), lambda i: (0, 0)),
                pl.BlockSpec((S * Q, S * C), lambda i: (0, 0)),
                pl.BlockSpec((S * C, C), lambda i: (0, 0)),
            ],
            out_specs=pl.BlockSpec((TB, C), lambda i: (i, 0)),
        ),
        compiler_params=pltpu.CompilerParams(
            dimension_semantics=("parallel",),
            # Explicit scoped-VMEM request: v5e default is 16 MiB; 32 MiB matches v6e/v7x
            # defaults and stays well under v7x's 64 MiB physical VMEM.
            vmem_limit_bytes=32 * 1024 * 1024,
        ),
    )(cand2d, wbd, bias_t, qrep, sel)
    return out[:B]


def reference(candidate_vector, weight_t, bias, query_vector):
    temp = jnp.tanh(candidate_vector @ weight_t + bias)        # (B, S, Q)
    scores = temp @ query_vector                               # (B, S)
    w = jax.nn.softmax(scores, axis=1)                         # (B, S)
    return jnp.einsum("bs,bsc->bc", w, candidate_vector)       # (B, C)


if __name__ == "__main__":
    # Small shapes consistent with the module: batch=2, seq=8, candidate_dim=32, query_dim=16
    B, S, C, Q = 2, 8, 32, 16
    key = jax.random.PRNGKey(0)
    k_x, k_w, k_b, k_q = jax.random.split(key, 4)

    candidate_vector = jax.random.normal(k_x, (B, S, C), dtype=jnp.float32)

    # nn.Linear(C, Q): weight (Q, C), bias (Q,), uniform init like PyTorch default.
    bound = 1.0 / (C ** 0.5)
    weight = jax.random.uniform(k_w, (Q, C), minval=-bound, maxval=bound, dtype=jnp.float32)
    bias = jax.random.uniform(k_b, (Q,), minval=-bound, maxval=bound, dtype=jnp.float32)
    weight_t = weight.T  # (C, Q)

    # attention_query_vector ~ U(-0.1, 0.1), shape (Q,)
    query_vector = jax.random.uniform(k_q, (Q,), minval=-0.1, maxval=0.1, dtype=jnp.float32)

    out = additive_attention(candidate_vector, weight_t, bias, query_vector)
    out = jax.block_until_ready(out)

    ref = reference(candidate_vector, weight_t, bias, query_vector)
    assert out.shape == (B, C), out.shape
    # Tolerance loosened slightly because the softmax denominator uses the EUP
    # approximate reciprocal (pl.reciprocal(approx=True)).
    assert jnp.allclose(out, ref, atol=1e-3, rtol=1e-3), float(jnp.max(jnp.abs(out - ref)))
    print("KERNEL_OK")
</pallas_src>

<mosaic_0001>
module attributes {stable_mosaic.version = 11 : i64} {
  func.func @additive_attention_kernel(%arg0: i32, %arg1: memref<8x256xf32, #tpu.memory_space<vmem>>, %arg2: memref<256x128xf32, #tpu.memory_space<vmem>>, %arg3: memref<1x128xf32, #tpu.memory_space<vmem>>, %arg4: memref<128x256xf32, #tpu.memory_space<vmem>>, %arg5: memref<256x32xf32, #tpu.memory_space<vmem>>, %arg6: memref<8x32xf32, #tpu.memory_space<vmem>>) attributes {dimension_semantics = [#tpu.dimension_semantics<parallel>], iteration_bounds = array<i64: 1>, scalar_prefetch = 0 : i64, scratch_operands = 0 : i64, tpu.core_type = #tpu.core_type<tc>, window_params = [{transform_indices = @transform_0, window_bounds = array<i64: 8, 256>}, {pipeline_mode = #tpu.pipeline_mode<synchronous>, transform_indices = @transform_1, window_bounds = array<i64: 256, 128>}, {pipeline_mode = #tpu.pipeline_mode<synchronous>, transform_indices = @transform_2, window_bounds = array<i64: 1, 128>}, {pipeline_mode = #tpu.pipeline_mode<synchronous>, transform_indices = @transform_3, window_bounds = array<i64: 128, 256>}, {pipeline_mode = #tpu.pipeline_mode<synchronous>, transform_indices = @transform_4, window_bounds = array<i64: 256, 32>}, {transform_indices = @transform_5, window_bounds = array<i64: 8, 32>}]} {
    %c0 = arith.constant 0 : index
    %c0_0 = arith.constant 0 : index
    %0 = vector.load %arg1[%c0, %c0_0] : memref<8x256xf32, #tpu.memory_space<vmem>>, vector<8x256xf32>
    %c0_1 = arith.constant 0 : index
    %c0_2 = arith.constant 0 : index
    %1 = vector.load %arg2[%c0_1, %c0_2] : memref<256x128xf32, #tpu.memory_space<vmem>>, vector<256x128xf32>
    %cst = arith.constant dense<0.000000e+00> : vector<8x128xf32>
    %2 = tpu.matmul %0, %1, %cst {dimension_numbers = #tpu.dot_dimension_numbers<[1], [0], [0], [1], [0, 0, 1, 1], [], []>} : vector<8x256xf32>, vector<256x128xf32>, vector<8x128xf32> -> vector<8x128xf32>
    %c0_3 = arith.constant 0 : index
    %c0_4 = arith.constant 0 : index
    %3 = vector.load %arg3[%c0_3, %c0_4] : memref<1x128xf32, #tpu.memory_space<vmem>>, vector<1x128xf32>
    %4 = vector.broadcast %3 : vector<1x128xf32> to vector<8x128xf32>
    %5 = arith.addf %2, %4 : vector<8x128xf32>
    %6 = math.tanh %5 : vector<8x128xf32>
    %c0_5 = arith.constant 0 : index
    %c0_6 = arith.constant 0 : index
    %7 = vector.load %arg4[%c0_5, %c0_6] : memref<128x256xf32, #tpu.memory_space<vmem>>, vector<128x256xf32>
    %cst_7 = arith.constant dense<0.000000e+00> : vector<8x256xf32>
    %8 = tpu.matmul %6, %7, %cst_7 {dimension_numbers = #tpu.dot_dimension_numbers<[1], [0], [0], [1], [0, 0, 1, 1], [], []>} : vector<8x128xf32>, vector<128x256xf32>, vector<8x256xf32> -> vector<8x256xf32>
    %cst_8 = arith.constant dense<0xFF800000> : vector<8xf32>
    %9 = vector.multi_reduction <maximumf>, %8, %cst_8 [1] : vector<8x256xf32> to vector<8xf32>
    %10 = vector.shape_cast %9 : vector<8xf32> to vector<8x1xf32>
    %11 = vector.broadcast %10 : vector<8x1xf32> to vector<8x256xf32>
    %12 = arith.subf %8, %11 : vector<8x256xf32>
    %13 = math.exp %12 : vector<8x256xf32>
    %cst_9 = arith.constant dense<0.000000e+00> : vector<8xf32>
    %14 = vector.multi_reduction <add>, %13, %cst_9 [1] : vector<8x256xf32> to vector<8xf32>
    %15 = vector.shape_cast %14 : vector<8xf32> to vector<8x1xf32>
    %16 = tpu.reciprocal %15 {approx = true} : vector<8x1xf32> -> vector<8x1xf32>
    %17 = vector.broadcast %16 : vector<8x1xf32> to vector<8x256xf32>
    %18 = arith.mulf %13, %17 : vector<8x256xf32>
    %19 = arith.mulf %0, %18 : vector<8x256xf32>
    %c0_10 = arith.constant 0 : index
    %c0_11 = arith.constant 0 : index
    %20 = vector.load %arg5[%c0_10, %c0_11] : memref<256x32xf32, #tpu.memory_space<vmem>>, vector<256x32xf32>
    %cst_12 = arith.constant dense<0.000000e+00> : vector<8x32xf32>
    %21 = tpu.matmul %19, %20, %cst_12 {dimension_numbers = #tpu.dot_dimension_numbers<[1], [0], [0], [1], [0, 0, 1, 1], [], []>} : vector<8x256xf32>, vector<256x32xf32>, vector<8x32xf32> -> vector<8x32xf32>
    %c0_13 = arith.constant 0 : index
    %c0_14 = arith.constant 0 : index
    %22 = vector.load %arg6[%c0_13, %c0_14] : memref<8x32xf32, #tpu.memory_space<vmem>>, vector<8x32xf32>
    tpu.vector_store %arg6[%c0_13, %c0_14], %21 {strides = array<i32>} : memref<8x32xf32, #tpu.memory_space<vmem>>, vector<8x32xf32>,
    return
  }
  func.func @transform_0(%arg0: i32) -> (i32, i32) {
    %c0_i32 = arith.constant 0 : i32
    %c0_i32_0 = arith.constant 0 : i32
    return %arg0, %c0_i32 : i32, i32
  }
  func.func @transform_1(%arg0: i32) -> (i32, i32) {
    %c0_i32 = arith.constant 0 : i32
    %c0_i32_0 = arith.constant 0 : i32
    %c0_i32_1 = arith.constant 0 : i32
    return %c0_i32, %c0_i32_0 : i32, i32
  }
  func.func @transform_2(%arg0: i32) -> (i32, i32) {
    %c0_i32 = arith.constant 0 : i32
    %c0_i32_0 = arith.constant 0 : i32
    %c0_i32_1 = arith.constant 0 : i32
    return %c0_i32, %c0_i32_0 : i32, i32
  }
  func.func @transform_3(%arg0: i32) -> (i32, i32) {
    %c0_i32 = arith.constant 0 : i32
    %c0_i32_0 = arith.constant 0 : i32
    %c0_i32_1 = arith.constant 0 : i32
    return %c0_i32, %c0_i32_0 : i32, i32
  }
  func.func @transform_4(%arg0: i32) -> (i32, i32) {
    %c0_i32 = arith.constant 0 : i32
    %c0_i32_0 = arith.constant 0 : i32
    %c0_i32_1 = arith.constant 0 : i32
    return %c0_i32, %c0_i32_0 : i32, i32
  }
  func.func @transform_5(%arg0: i32) -> (i32, i32) {
    %c0_i32 = arith.constant 0 : i32
    %c0_i32_0 = arith.constant 0 : i32
    return %arg0, %c0_i32 : i32, i32
  }
}

</mosaic_0001>

<llo_original>
// kernel: tpu_custom_call.1
$region0: #{tpu_custom_call.1}
  #allocation0 [shape = 'u32[]', space=smem, size = 0x4, offset = 0x4, fixed_abs, tag = 'smem constant byte address 0x4 - core index']
  #allocation1 [shape = 'u32[144,128]{1,0:T(1,128)}', space=vmem, size = 0x12000, scoped, tag = 'internal scratch']
  %s0 = inlined_call_operand.vmem [shape: f32[8,256], index: 0, kind: input, shape index: {}]
  %s1 = inlined_call_operand.vmem [shape: f32[256,128], index: 1, kind: input, shape index: {}]
  %s2 = inlined_call_operand.vmem [shape: f32[1,128], index: 2, kind: input, shape index: {}]
  %s3 = inlined_call_operand.hbm [shape: f32[128,256], index: 3, kind: input, shape index: {}]
  %s4 = inlined_call_operand.vmem [shape: f32[256,32], index: 4, kind: input, shape index: {}]
  %s5 = inlined_call_operand.hbm [shape: f32[8,32], index: 5, kind: output, shape index: {}]
  %s6 = sld [smem:[#allocation0]]
  $region34: #{tpu_custom_call.1} parent=0
    _
  %s8 = ssub.s32 1, %s6
  %s9 = scalar_select 0, %s8, %s6
  $region1: #{tpu_custom_call.1} parent=0
    #allocation2 [shape = 'u8[131072]{0}', space=vmem, size = 0x20000, scoped, tag = 'input window, operand 3, single buffered']
    #allocation3 [shape = 's32[1]{0}', space=sflag, size = 0x4, scoped, tag = 'scoped memory for tpu_custom_call.1']
    #allocation4 [shape = 's32[1]{0}', space=sflag, size = 0x4, scoped, tag = 'scoped memory for tpu_custom_call.1']
    #allocation5 [shape = 'u8[4096]{0}', space=vmem, size = 0x1000, scoped, tag = 'output window, operand 0, single buffered']
    %10 = vsyncpa [#allocation3], 0
    %11 = vsyncpa [#allocation4], 0
    // Predicated region
    $region2: #{tpu_custom_call.1} parent=1 // pred_check
      _
    $region3: #{tpu_custom_call.1} parent=1 // pred_check_branch
      %13 = sbr.rel (0) target = $region5
    $region4: #{tpu_custom_call.1} parent=1 // pred_region
      _
    $region5: #{tpu_custom_call.1} parent=1 // pred_fallthru
      _
    // Predicated region
    $region6: #{tpu_custom_call.1} parent=1 // pred_check
      _
    $region7: #{tpu_custom_call.1} parent=1 // pred_check_branch
      %15 = sbr.rel (0) target = $region9
    $region8: #{tpu_custom_call.1} parent=1 // pred_region
      _
    $region9: #{tpu_custom_call.1} parent=1 // pred_fallthru
      _
    // Predicated region
    $region10: #{tpu_custom_call.1} parent=1 // pred_check
      _
    $region11: #{tpu_custom_call.1} parent=1 // pred_check_branch
      %17 = sbr.rel (0) target = $region13
    $region12: #{tpu_custom_call.1} parent=1 // pred_region
      _
    $region13: #{tpu_custom_call.1} parent=1 // pred_fallthru
      _
    // Predicated region
    $region14: #{tpu_custom_call.1} parent=1 // pred_check
      _
    $region15: #{tpu_custom_call.1} parent=1 // pred_check_branch
      %19 = sbr.rel (0) target = $region17
    $region16: #{tpu_custom_call.1} parent=1 // pred_region
      %s21 = ssub.s32 4096, 4096
      %22 = vsyncadd [#allocation3], %s21
      %s23 = sshll.u32 [#allocation2], 4
      %s24 = int_to_ptr.vmem [resolvable:$true] %s23
      %29 = dma.hbm_to_vmem [thread:$0]  %s3, 4096, %s24, [#allocation3], 256, 256, 16
    $region17: #{tpu_custom_call.1} parent=1 // pred_fallthru
      _
    // Predicated region
    $region18: #{tpu_custom_call.1} parent=1 // pred_check
      _
    $region19: #{tpu_custom_call.1} parent=1 // pred_check_branch
      %31 = sbr.rel (0) target = $region21
    $region20: #{tpu_custom_call.1} parent=1 // pred_region
      _
    $region21: #{tpu_custom_call.1} parent=1 // pred_fallthru
      _
    // Predicated region
    $region22: #{tpu_custom_call.1} parent=1 // pred_check
      _
    $region23: #{tpu_custom_call.1} parent=1 // pred_check_branch
      %33 = sbr.rel (0) target = $region25
    $region24: #{tpu_custom_call.1} parent=1 // pred_region
      %34 = dma.done [#allocation3], 4096
    $region25: #{tpu_custom_call.1} parent=1 // pred_fallthru
      _
    %v35 = vld [vmem:[%s0] sm:$0xff]
    %v36 = vld [vmem:[%s0 + $0x8] sm:$0xff]
    %v37 = vld [vmem:[%s1] sm:$0xff]
    %v38 = vld [vmem:[%s1 + $0x8] sm:$0xff]
    %v39 = vld [vmem:[%s1 + $0x10] sm:$0xff]
    %v40 = vld [vmem:[%s1 + $0x18] sm:$0xff]
    %v41 = vld [vmem:[%s1 + $0x20] sm:$0xff]
    %v42 = vld [vmem:[%s1 + $0x28] sm:$0xff]
    %v43 = vld [vmem:[%s1 + $0x30] sm:$0xff]
    %v44 = vld [vmem:[%s1 + $0x38] sm:$0xff]
    %v45 = vld [vmem:[%s1 + $0x40] sm:$0xff]
    %v46 = vld [vmem:[%s1 + $0x48] sm:$0xff]
    %v47 = vld [vmem:[%s1 + $0x50] sm:$0xff]
    %v48 = vld [vmem:[%s1 + $0x58] sm:$0xff]
    %v49 = vld [vmem:[%s1 + $0x60] sm:$0xff]
    %v50 = vld [vmem:[%s1 + $0x68] sm:$0xff]
    %v51 = vld [vmem:[%s1 + $0x70] sm:$0xff]
    %v52 = vld [vmem:[%s1 + $0x78] sm:$0xff]
    %v53 = vld [vmem:[%s1 + $0x80] sm:$0xff]
    %v54 = vld [vmem:[%s1 + $0x88] sm:$0xff]
    %v55 = vld [vmem:[%s1 + $0x90] sm:$0xff]
    %v56 = vld [vmem:[%s1 + $0x98] sm:$0xff]
    %v57 = vld [vmem:[%s1 + $0xa0] sm:$0xff]
    %v58 = vld [vmem:[%s1 + $0xa8] sm:$0xff]
    %v59 = vld [vmem:[%s1 + $0xb0] sm:$0xff]
    %v60 = vld [vmem:[%s1 + $0xb8] sm:$0xff]
    %v61 = vld [vmem:[%s1 + $0xc0] sm:$0xff]
    %v62 = vld [vmem:[%s1 + $0xc8] sm:$0xff]
    %v63 = vld [vmem:[%s1 + $0xd0] sm:$0xff]
    %v64 = vld [vmem:[%s1 + $0xd8] sm:$0xff]
    %v65 = vld [vmem:[%s1 + $0xe0] sm:$0xff]
    %v66 = vld [vmem:[%s1 + $0xe8] sm:$0xff]
    %v67 = vld [vmem:[%s1 + $0xf0] sm:$0xff]
    %v68 = vld [vmem:[%s1 + $0xf8] sm:$0xff]
    %v69 = vld [vmem:[%s2] sm:$0x1]
    %v71 = vlaneseq
    %v72 = vshrl.u32 %v71, 7
    %v73 = vsub.s32 0, %v72
    %v74 = vrot.slane %v69, %v73
    %76 = vmatprep.subr.mxu0 0.0
    %77 = vmatpush1.msra.mxu0 %v37
    %78 = vmatprep.subr.mxu0 0.0
    %79 = vmatpush1.msra.mxu0 %v38
    %80 = vmatprep.subr.mxu0 0.0
    %81 = vmatpush1.msra.mxu0 %v39
    %82 = vmatprep.subr.mxu0 0.0
    %83 = vmatpush1.msra.mxu0 %v40
    %84 = vmatprep.subr.mxu0 0.0
    %85 = vmatpush1.msra.mxu0 %v41
    %86 = vmatprep.subr.mxu0 0.0
    %87 = vmatpush1.msra.mxu0 %v42
    %88 = vmatprep.subr.mxu0 0.0
    %89 = vmatpush1.msra.mxu0 %v43
    %90 = vmatprep.subr.mxu0 0.0
    %91 = vmatpush1.msra.mxu0 %v44
    %92 = vmatprep.subr.mxu0 0.0
    %93 = vmatpush1.msra.mxu0 %v45
    %94 = vmatprep.subr.mxu0 0.0
    %95 = vmatpush1.msra.mxu0 %v46
    %96 = vmatprep.subr.mxu0 0.0
    %97 = vmatpush1.msra.mxu0 %v47
    %98 = vmatprep.subr.mxu0 0.0
    %99 = vmatpush1.msra.mxu0 %v48
    %100 = vmatprep.subr.mxu0 0.0
    %101 = vmatpush1.msra.mxu0 %v49
    %102 = vmatprep.subr.mxu0 0.0
    %103 = vmatpush1.msra.mxu0 %v50
    %104 = vmatprep.subr.mxu0 0.0
    %105 = vmatpush1.msra.mxu0 %v51
    %106 = vmatprep.subr.mxu0 0.0
    %107 = vmatpush1.msra.mxu0 %v52
    %108 = vmatprep.subr.mxu0 0.0
    %109 = vmatpush1.msra.mxu0 %v53
    %110 = vmatprep.subr.mxu0 0.0
    %111 = vmatpush1.msra.mxu0 %v54
    %112 = vmatprep.subr.mxu0 0.0
    %113 = vmatpush1.msra.mxu0 %v55
    %114 = vmatprep.subr.mxu0 0.0
    %115 = vmatpush1.msra.mxu0 %v56
    %116 = vmatprep.subr.mxu0 0.0
    %117 = vmatpush1.msra.mxu0 %v57
    %118 = vmatprep.subr.mxu0 0.0
    %119 = vmatpush1.msra.mxu0 %v58
    %120 = vmatprep.subr.mxu0 0.0
    %121 = vmatpush1.msra.mxu0 %v59
    %122 = vmatprep.subr.mxu0 0.0
    %123 = vmatpush1.msra.mxu0 %v60
    %124 = vmatprep.subr.mxu0 0.0
    %125 = vmatpush1.msra.mxu0 %v61
    %126 = vmatprep.subr.mxu0 0.0
    %127 = vmatpush1.msra.mxu0 %v62
    %128 = vmatprep.subr.mxu0 0.0
    %129 = vmatpush1.msra.mxu0 %v63
    %130 = vmatprep.subr.mxu0 0.0
    %131 = vmatpush1.msra.mxu0 %v64
    %132 = vmatprep.subr.mxu0 0.0
    %133 = vmatpush1.msra.mxu0 %v65
    %134 = vmatprep.subr.mxu0 0.0
    %135 = vmatpush1.msra.mxu0 %v66
    %136 = vmatprep.subr.mxu0 0.0
    %137 = vmatpush1.msra.mxu0 %v67
    %138 = vmatprep.subr.mxu0 0.0
    %139 = vmatpush1.msra.mxu0 %v68
    %140 = vmatprep.mubr.f32.mxu0 %v36
    %141 = vmatmul.mubr.f32.gmra.mrb[0].mxu0 %v35
    %v142 = vpop.f32.mrb[0].mxu0
    %v143 = vadd.f32 %v74, %v142
    %v144 = vpop.f32.mrb[0].mxu0
    %145 = vdwg.mxu0
    %v146 = vtanh.pop %v143
    %v147 = vld [vmem:[#allocation2] sm:$0xff]
    %v148 = vld [vmem:[#allocation2 + $0x8] sm:$0xff]
    %v149 = vld [vmem:[#allocation2 + $0x10] sm:$0xff]
    %v150 = vld [vmem:[#allocation2 + $0x18] sm:$0xff]
    %v151 = vld [vmem:[#allocation2 + $0x20] sm:$0xff]
    %v152 = vld [vmem:[#allocation2 + $0x28] sm:$0xff]
    %v153 = vld [vmem:[#allocation2 + $0x30] sm:$0xff]
    %v154 = vld [vmem:[#allocation2 + $0x38] sm:$0xff]
    %v155 = vld [vmem:[#allocation2 + $0x40] sm:$0xff]
    %v156 = vld [vmem:[#allocation2 + $0x48] sm:$0xff]
    %v157 = vld [vmem:[#allocation2 + $0x50] sm:$0xff]
    %v158 = vld [vmem:[#allocation2 + $0x58] sm:$0xff]
    %v159 = vld [vmem:[#allocation2 + $0x60] sm:$0xff]
    %v160 = vld [vmem:[#allocation2 + $0x68] sm:$0xff]
    %v161 = vld [vmem:[#allocation2 + $0x70] sm:$0xff]
    %v162 = vld [vmem:[#allocation2 + $0x78] sm:$0xff]
    %v163 = vld [vmem:[#allocation2 + $0x80] sm:$0xff]
    %v164 = vld [vmem:[#allocation2 + $0x88] sm:$0xff]
    %v165 = vld [vmem:[#allocation2 + $0x90] sm:$0xff]
    %v166 = vld [vmem:[#allocation2 + $0x98] sm:$0xff]
    %v167 = vld [vmem:[#allocation2 + $0xa0] sm:$0xff]
    %v168 = vld [vmem:[#allocation2 + $0xa8] sm:$0xff]
    %v169 = vld [vmem:[#allocation2 + $0xb0] sm:$0xff]
    %v170 = vld [vmem:[#allocation2 + $0xb8] sm:$0xff]
    %v171 = vld [vmem:[#allocation2 + $0xc0] sm:$0xff]
    %v172 = vld [vmem:[#allocation2 + $0xc8] sm:$0xff]
    %v173 = vld [vmem:[#allocation2 + $0xd0] sm:$0xff]
    %v174 = vld [vmem:[#allocation2 + $0xd8] sm:$0xff]
    %v175 = vld [vmem:[#allocation2 + $0xe0] sm:$0xff]
    %v176 = vld [vmem:[#allocation2 + $0xe8] sm:$0xff]
    %v177 = vld [vmem:[#allocation2 + $0xf0] sm:$0xff]
    %v178 = vld [vmem:[#allocation2 + $0xf8] sm:$0xff]
    %179 = vmatprep.subr.mxu0 %v148
    %180 = vmatpush1.msra.mxu0 %v147
    %181 = vmatprep.subr.mxu0 %v150
    %182 = vmatpush1.msra.mxu0 %v149
    %183 = vmatprep.subr.mxu0 %v152
    %184 = vmatpush1.msra.mxu0 %v151
    %185 = vmatprep.subr.mxu0 %v154
    %186 = vmatpush1.msra.mxu0 %v153
    %187 = vmatprep.subr.mxu0 %v156
    %188 = vmatpush1.msra.mxu0 %v155
    %189 = vmatprep.subr.mxu0 %v158
    %190 = vmatpush1.msra.mxu0 %v157
    %191 = vmatprep.subr.mxu0 %v160
    %192 = vmatpush1.msra.mxu0 %v159
    %193 = vmatprep.subr.mxu0 %v162
    %194 = vmatpush1.msra.mxu0 %v161
    %195 = vmatprep.subr.mxu0 %v164
    %196 = vmatpush1.msra.mxu0 %v163
    %197 = vmatprep.subr.mxu0 %v166
    %198 = vmatpush1.msra.mxu0 %v165
    %199 = vmatprep.subr.mxu0 %v168
    %200 = vmatpush1.msra.mxu0 %v167
    %201 = vmatprep.subr.mxu0 %v170
    %202 = vmatpush1.msra.mxu0 %v169
    %203 = vmatprep.subr.mxu0 %v172
    %204 = vmatpush1.msra.mxu0 %v171
    %205 = vmatprep.subr.mxu0 %v174
    %206 = vmatpush1.msra.mxu0 %v173
    %207 = vmatprep.subr.mxu0 %v176
    %208 = vmatpush1.msra.mxu0 %v175
    %209 = vmatprep.subr.mxu0 %v178
    %210 = vmatpush1.msra.mxu0 %v177
    %211 = vmatprep.subr.mxu0 0.0
    %212 = vmatpush1.msra.mxu0 0.0
    %213 = vmatprep.subr.mxu0 0.0
    %214 = vmatpush1.msra.mxu0 0.0
    %215 = vmatprep.subr.mxu0 0.0
    %216 = vmatpush1.msra.mxu0 0.0
    %217 = vmatprep.subr.mxu0 0.0
    %218 = vmatpush1.msra.mxu0 0.0
    %219 = vmatprep.subr.mxu0 0.0
    %220 = vmatpush1.msra.mxu0 0.0
    %221 = vmatprep.subr.mxu0 0.0
    %222 = vmatpush1.msra.mxu0 0.0
    %223 = vmatprep.subr.mxu0 0.0
    %224 = vmatpush1.msra.mxu0 0.0
    %225 = vmatprep.subr.mxu0 0.0
    %226 = vmatpush1.msra.mxu0 0.0
    %227 = vmatprep.subr.mxu0 0.0
    %228 = vmatpush1.msra.mxu0 0.0
    %229 = vmatprep.subr.mxu0 0.0
    %230 = vmatpush1.msra.mxu0 0.0
    %231 = vmatprep.subr.mxu0 0.0
    %232 = vmatpush1.msra.mxu0 0.0
    %233 = vmatprep.subr.mxu0 0.0
    %234 = vmatpush1.msra.mxu0 0.0
    %235 = vmatprep.subr.mxu0 0.0
    %236 = vmatpush1.msra.mxu0 0.0
    %237 = vmatprep.subr.mxu0 0.0
    %238 = vmatpush1.msra.mxu0 0.0
    %239 = vmatprep.subr.mxu0 0.0
    %240 = vmatpush1.msra.mxu0 0.0
    %241 = vmatprep.subr.mxu0 0.0
    %242 = vmatpush1.msra.mxu0 0.0
    %243 = vmatprep.mubr.f32.mxu0 0.0
    %244 = vmatmul.mubr.f32.gmra.mrb[0].mxu0 %v146
    %v245 = vpop.f32.mrb[0].mxu0
    %v246 = vadd.f32 0.0, %v245
    %v247 = vpop.f32.mrb[0].mxu0
    %v248 = vadd.f32 0.0, %v247
    %249 = vdwg.mxu0
    %v250 = vmax.f32 %v246, %v248
    %251 = vmax.xlane.f32.xlu0 %v250
    %v252 = vpop.xlane.xlu0 %251
    %v253 = vsub.f32 %v246, %v252
    %v254 = vsub.f32 %v248, %v252
    %v255 = vmul.f32 %v253, 1.442695
    %v256 = vpow.pop %v255
    %v257 = vmul.f32 %v254, 1.442695
    %v258 = vpow.pop %v257
    %v259 = vadd.f32 %v256, %v258
    %260 = vadd.xlane.f32.xlu0 %v259
    %v261 = vpop.xlane.xlu0 %260
    %v262 = vrcp.pop %v261
    %v263 = vmul.f32 %v256, %v262
    %v264 = vmul.f32 %v258, %v262
    %v265 = vmul.f32 %v35, %v263
    %v266 = vmul.f32 %v36, %v264
    %v267 = vld [vmem:[%s4] sm:$0xff]
    %v268 = vld [vmem:[%s4 + $0x8] sm:$0xff]
    %v269 = vld [vmem:[%s4 + $0x10] sm:$0xff]
    %v270 = vld [vmem:[%s4 + $0x18] sm:$0xff]
    %v271 = vld [vmem:[%s4 + $0x20] sm:$0xff]
    %v272 = vld [vmem:[%s4 + $0x28] sm:$0xff]
    %v273 = vld [vmem:[%s4 + $0x30] sm:$0xff]
    %v274 = vld [vmem:[%s4 + $0x38] sm:$0xff]
    %v275 = vld [vmem:[%s4 + $0x40] sm:$0xff]
    %v276 = vld [vmem:[%s4 + $0x48] sm:$0xff]
    %v277 = vld [vmem:[%s4 + $0x50] sm:$0xff]
    %v278 = vld [vmem:[%s4 + $0x58] sm:$0xff]
    %v279 = vld [vmem:[%s4 + $0x60] sm:$0xff]
    %v280 = vld [vmem:[%s4 + $0x68] sm:$0xff]
    %v281 = vld [vmem:[%s4 + $0x70] sm:$0xff]
    %v282 = vld [vmem:[%s4 + $0x78] sm:$0xff]
    %v283 = vld [vmem:[%s4 + $0x80] sm:$0xff]
    %v284 = vld [vmem:[%s4 + $0x88] sm:$0xff]
    %v285 = vld [vmem:[%s4 + $0x90] sm:$0xff]
    %v286 = vld [vmem:[%s4 + $0x98] sm:$0xff]
    %v287 = vld [vmem:[%s4 + $0xa0] sm:$0xff]
    %v288 = vld [vmem:[%s4 + $0xa8] sm:$0xff]
    %v289 = vld [vmem:[%s4 + $0xb0] sm:$0xff]
    %v290 = vld [vmem:[%s4 + $0xb8] sm:$0xff]
    %v291 = vld [vmem:[%s4 + $0xc0] sm:$0xff]
    %v292 = vld [vmem:[%s4 + $0xc8] sm:$0xff]
    %v293 = vld [vmem:[%s4 + $0xd0] sm:$0xff]
    %v294 = vld [vmem:[%s4 + $0xd8] sm:$0xff]
    %v295 = vld [vmem:[%s4 + $0xe0] sm:$0xff]
    %v296 = vld [vmem:[%s4 + $0xe8] sm:$0xff]
    %v297 = vld [vmem:[%s4 + $0xf0] sm:$0xff]
    %v298 = vld [vmem:[%s4 + $0xf8] sm:$0xff]
    %299 = vmatprep.subr.mxu0 0.0
    %300 = vmatpush1.msra.mxu0 %v267
    %301 = vmatprep.subr.mxu0 0.0
    %302 = vmatpush1.msra.mxu0 %v268
    %303 = vmatprep.subr.mxu0 0.0
    %304 = vmatpush1.msra.mxu0 %v269
    %305 = vmatprep.subr.mxu0 0.0
    %306 = vmatpush1.msra.mxu0 %v270
    %307 = vmatprep.subr.mxu0 0.0
    %308 = vmatpush1.msra.mxu0 %v271
    %309 = vmatprep.subr.mxu0 0.0
    %310 = vmatpush1.msra.mxu0 %v272
    %311 = vmatprep.subr.mxu0 0.0
    %312 = vmatpush1.msra.mxu0 %v273
    %313 = vmatprep.subr.mxu0 0.0
    %314 = vmatpush1.msra.mxu0 %v274
    %315 = vmatprep.subr.mxu0 0.0
    %316 = vmatpush1.msra.mxu0 %v275
    %317 = vmatprep.subr.mxu0 0.0
    %318 = vmatpush1.msra.mxu0 %v276
    %319 = vmatprep.subr.mxu0 0.0
    %320 = vmatpush1.msra.mxu0 %v277
    %321 = vmatprep.subr.mxu0 0.0
    %322 = vmatpush1.msra.mxu0 %v278
    %323 = vmatprep.subr.mxu0 0.0
    %324 = vmatpush1.msra.mxu0 %v279
    %325 = vmatprep.subr.mxu0 0.0
    %326 = vmatpush1.msra.mxu0 %v280
    %327 = vmatprep.subr.mxu0 0.0
    %328 = vmatpush1.msra.mxu0 %v281
    %329 = vmatprep.subr.mxu0 0.0
    %330 = vmatpush1.msra.mxu0 %v282
    %331 = vmatprep.subr.mxu0 0.0
    %332 = vmatpush1.msra.mxu0 %v283
    %333 = vmatprep.subr.mxu0 0.0
    %334 = vmatpush1.msra.mxu0 %v284
    %335 = vmatprep.subr.mxu0 0.0
    %336 = vmatpush1.msra.mxu0 %v285
    %337 = vmatprep.subr.mxu0 0.0
    %338 = vmatpush1.msra.mxu0 %v286
    %339 = vmatprep.subr.mxu0 0.0
    %340 = vmatpush1.msra.mxu0 %v287
    %341 = vmatprep.subr.mxu0 0.0
    %342 = vmatpush1.msra.mxu0 %v288
    %343 = vmatprep.subr.mxu0 0.0
    %344 = vmatpush1.msra.mxu0 %v289
    %345 = vmatprep.subr.mxu0 0.0
    %346 = vmatpush1.msra.mxu0 %v290
    %347 = vmatprep.subr.mxu0 0.0
    %348 = vmatpush1.msra.mxu0 %v291
    %349 = vmatprep.subr.mxu0 0.0
    %350 = vmatpush1.msra.mxu0 %v292
    %351 = vmatprep.subr.mxu0 0.0
    %352 = vmatpush1.msra.mxu0 %v293
    %353 = vmatprep.subr.mxu0 0.0
    %354 = vmatpush1.msra.mxu0 %v294
    %355 = vmatprep.subr.mxu0 0.0
    %356 = vmatpush1.msra.mxu0 %v295
    %357 = vmatprep.subr.mxu0 0.0
    %358 = vmatpush1.msra.mxu0 %v296
    %359 = vmatprep.subr.mxu0 0.0
    %360 = vmatpush1.msra.mxu0 %v297
    %361 = vmatprep.subr.mxu0 0.0
    %362 = vmatpush1.msra.mxu0 %v298
    %363 = vmatprep.mubr.f32.mxu0 %v266
    %364 = vmatmul.mubr.f32.gmra.mrb[0].mxu0 %v265
    %v365 = vpop.f32.mrb[0].mxu0
    %v366 = vadd.f32 0.0, %v365
    %v367 = vpop.f32.mrb[0].mxu0
    %368 = vdwg.mxu0
    %vm369 = vcmask 261120
    %370 = vst.msk [vmem:[#allocation5] sm:$0xff] %vm369, %v366
    // Predicated region
    $region26: #{tpu_custom_call.1} parent=1 // pred_check
      _
    $region27: #{tpu_custom_call.1} parent=1 // pred_check_branch
      %372 = sbr.rel (0) target = $region29
    $region28: #{tpu_custom_call.1} parent=1 // pred_region
      %s374 = ssub.s32 128, 128
      %375 = vsyncadd [#allocation4], %s374
      %s377 = sshll.u32 [#allocation5], 4
      %s378 = int_to_ptr.vmem [resolvable:$true] %s377
      %380 = dma.vmem_to_hbm [thread:$0]  %s378, 128, %s5, [#allocation4]
    $region29: #{tpu_custom_call.1} parent=1 // pred_fallthru
      _
    // Predicated region
    $region30: #{tpu_custom_call.1} parent=1 // pred_check
      _
    $region31: #{tpu_custom_call.1} parent=1 // pred_check_branch
      %382 = sbr.rel (0) target = $region33
    $region32: #{tpu_custom_call.1} parent=1 // pred_region
      %383 = dma.done [#allocation4], 128
    $region33: #{tpu_custom_call.1} parent=1 // pred_fallthru
      _
    %384 = vsyncpa [#allocation3], 1
    %385 = vsyncpa [#allocation4], 1

</llo_original>
